<compile_context>
chip_gen: v7x
topology: tpu7x:2x2x1
jax: 0.10.0
libtpu: 0.0.40
codegen_flags: <defaults>
</compile_context>

<pallas_src>
import functools

import jax
import jax.numpy as jnp
from jax.experimental import pallas as pl
from jax.experimental.pallas import tpu as pltpu


def _round_up(x, m):
    return (x + m - 1) // m * m


def mlp_kernel(x_ref, p_ref, o_ref, *, d_in_pad, h_pad, d_out_pad):
    # Static slices into the packed, sublane-aligned parameter slab (zero cost).
    w1 = p_ref[0:d_in_pad, 0:h_pad]                              # (d_in_pad, h_pad)
    b1 = p_ref[d_in_pad:d_in_pad + 1, 0:h_pad].astype(jnp.float32)
    w2_row = d_in_pad + 8
    w2 = p_ref[w2_row:w2_row + h_pad, 0:d_out_pad]               # (h_pad, d_out_pad)
    b2_row = w2_row + h_pad
    b2 = p_ref[b2_row:b2_row + 1, 0:d_out_pad].astype(jnp.float32)

    # fc1 on the MXU with f32 accumulation; bias + ReLU in f32 on the VPU.
    h = jnp.dot(x_ref[...], w1, preferred_element_type=jnp.float32)
    h = jnp.maximum(h + b1, 0.0)
    # fc2: cast h back to the param dtype so bf16 operands hit the MXU fast path.
    out = jnp.dot(h.astype(w2.dtype), w2, preferred_element_type=jnp.float32)
    o_ref[...] = (out + b2).astype(o_ref.dtype)


def _pack_params(w1, b1, w2, b2, *, d_in_pad, h_pad, d_out_pad, lane, dtype):
    """Pack W1/b1/W2/b2 into one (rows, lane) slab, sublane(8)-aligned regions."""
    d_in, h = w1.shape
    d_out = w2.shape[1]
    rows = d_in_pad + 8 + h_pad + 8
    slab = jnp.zeros((rows, lane), dtype)
    slab = slab.at[0:d_in, 0:h].set(w1.astype(dtype))
    slab = slab.at[d_in_pad, 0:h].set(b1.reshape(-1).astype(dtype))
    slab = slab.at[d_in_pad + 8:d_in_pad + 8 + h, 0:d_out].set(w2.astype(dtype))
    slab = slab.at[d_in_pad + 8 + h_pad, 0:d_out].set(b2.reshape(-1).astype(dtype))
    return slab


def simple_regressor_forward(x, w1, b1, w2, b2, *, block_b=512, use_bf16=False):
    """x: (B, D_in); w1: (D_in, H); b1: (1, H); w2: (H, D_out); b2: (1, D_out).

    Math matches PyTorch nn.Linear (weights stored pre-transposed as (in, out)):
        relu(x @ W1 + b1) @ W2 + b2
    """
    B, d_in = x.shape
    h = w1.shape[1]
    d_out = w2.shape[1]

    d_in_pad = _round_up(d_in, 8)
    h_pad = _round_up(h, 128)
    d_out_pad = _round_up(d_out, 128)
    lane = max(h_pad, d_out_pad)

    op_dtype = jnp.bfloat16 if use_bf16 else jnp.float32
    slab = _pack_params(w1, b1, w2, b2, d_in_pad=d_in_pad, h_pad=h_pad,
                        d_out_pad=d_out_pad, lane=lane, dtype=op_dtype)

    # Batch tiling: TB a multiple of 8, weights resident across the grid.
    b_pad = _round_up(B, 8)
    tb = min(block_b, b_pad)
    b_pad = _round_up(b_pad, tb)
    x_p = jnp.zeros((b_pad, d_in_pad), op_dtype).at[:B, :d_in].set(x.astype(op_dtype))

    kernel = functools.partial(mlp_kernel, d_in_pad=d_in_pad, h_pad=h_pad,
                               d_out_pad=d_out_pad)
    out = pl.pallas_call(
        kernel,
        out_shape=jax.ShapeDtypeStruct((b_pad, d_out_pad), jnp.float32),
        grid=(b_pad // tb,),
        in_specs=[
            pl.BlockSpec((tb, d_in_pad), lambda i: (i, 0)),      # streamed batch tile
            pl.BlockSpec(slab.shape, lambda i: (0, 0)),          # params: one DMA, resident
        ],
        out_specs=pl.BlockSpec((tb, d_out_pad), lambda i: (i, 0)),  # lane-dense output slab
        compiler_params=pltpu.CompilerParams(
            dimension_semantics=("parallel",)),                  # shard B across v7x's 2 TCs
    )(x_p, slab)

    return out[:B, :d_out]


def init_params(key, input_dim, hidden_dim, output_dim):
    """Deterministic init mimicking nn.Linear default U(-1/sqrt(fan_in), 1/sqrt(fan_in))."""
    k1, k2, k3, k4 = jax.random.split(key, 4)
    bound1 = 1.0 / (input_dim ** 0.5)
    bound2 = 1.0 / (hidden_dim ** 0.5)
    # Stored as (in, out) == PyTorch weight (out, in) transposed.
    w1 = jax.random.uniform(k1, (input_dim, hidden_dim), jnp.float32, -bound1, bound1)
    b1 = jax.random.uniform(k2, (1, hidden_dim), jnp.float32, -bound1, bound1)
    w2 = jax.random.uniform(k3, (hidden_dim, output_dim), jnp.float32, -bound2, bound2)
    b2 = jax.random.uniform(k4, (1, output_dim), jnp.float32, -bound2, bound2)
    return w1, b1, w2, b2


if __name__ == "__main__":
    # Small shapes consistent with the module: batch=8, input_dim=16, hidden=50, out=1.
    batch, input_dim, hidden_dim, output_dim = 8, 16, 50, 1

    key = jax.random.PRNGKey(0)
    kx, kp = jax.random.split(key)
    x = jax.random.normal(kx, (batch, input_dim), jnp.float32)
    w1, b1, w2, b2 = init_params(kp, input_dim, hidden_dim, output_dim)

    # f32 path: bit-tight check against the plain-JAX reference.
    out = jax.block_until_ready(simple_regressor_forward(x, w1, b1, w2, b2))
    ref = jnp.maximum(x @ w1 + b1, 0.0) @ w2 + b2
    assert out.shape == (batch, output_dim)
    assert jnp.allclose(out, ref, atol=1e-5, rtol=1e-5)

    # bf16-operand path (v6e/v7x throughput variant): compare against a reference
    # that applies the same bf16 quantization of operands with f32 accumulation.
    out_bf16 = jax.block_until_ready(
        simple_regressor_forward(x, w1, b1, w2, b2, use_bf16=True))
    xq = x.astype(jnp.bfloat16)
    w1q, b1q = w1.astype(jnp.bfloat16), b1.astype(jnp.bfloat16).astype(jnp.float32)
    w2q, b2q = w2.astype(jnp.bfloat16), b2.astype(jnp.bfloat16).astype(jnp.float32)
    hq = jnp.maximum(jnp.dot(xq, w1q, preferred_element_type=jnp.float32) + b1q, 0.0)
    ref_bf16 = jnp.dot(hq.astype(jnp.bfloat16), w2q,
                       preferred_element_type=jnp.float32) + b2q
    assert out_bf16.shape == (batch, output_dim)
    assert jnp.allclose(out_bf16, ref_bf16, atol=1e-4, rtol=1e-4)

    print("KERNEL_OK")
</pallas_src>

<mosaic_0001>
module attributes {stable_mosaic.version = 11 : i64} {
  func.func @mlp_kernel(%arg0: i32, %arg1: memref<8x16xf32, #tpu.memory_space<vmem>>, %arg2: memref<160x128xf32, #tpu.memory_space<vmem>>, %arg3: memref<8x128xf32, #tpu.memory_space<vmem>>) attributes {dimension_semantics = [#tpu.dimension_semantics<parallel>], iteration_bounds = array<i64: 1>, scalar_prefetch = 0 : i64, scratch_operands = 0 : i64, tpu.core_type = #tpu.core_type<tc>, window_params = [{transform_indices = @transform_0, window_bounds = array<i64: 8, 16>}, {pipeline_mode = #tpu.pipeline_mode<synchronous>, transform_indices = @transform_1, window_bounds = array<i64: 160, 128>}, {transform_indices = @transform_2, window_bounds = array<i64: 8, 128>}]} {
    %c0 = arith.constant 0 : index
    %c0_0 = arith.constant 0 : index
    %0 = vector.load %arg2[%c0, %c0_0] : memref<160x128xf32, #tpu.memory_space<vmem>>, vector<16x128xf32>
    %c16 = arith.constant 16 : index
    %c0_1 = arith.constant 0 : index
    %1 = vector.load %arg2[%c16, %c0_1] : memref<160x128xf32, #tpu.memory_space<vmem>>, vector<1x128xf32>
    %c24 = arith.constant 24 : index
    %c0_2 = arith.constant 0 : index
    %2 = vector.load %arg2[%c24, %c0_2] : memref<160x128xf32, #tpu.memory_space<vmem>>, vector<128x128xf32>
    %c152 = arith.constant 152 : index
    %c0_3 = arith.constant 0 : index
    %3 = vector.load %arg2[%c152, %c0_3] : memref<160x128xf32, #tpu.memory_space<vmem>>, vector<1x128xf32>
    %c0_4 = arith.constant 0 : index
    %c0_5 = arith.constant 0 : index
    %4 = vector.load %arg1[%c0_4, %c0_5] : memref<8x16xf32, #tpu.memory_space<vmem>>, vector<8x16xf32>
    %cst = arith.constant dense<0.000000e+00> : vector<8x128xf32>
    %5 = tpu.matmul %4, %0, %cst {dimension_numbers = #tpu.dot_dimension_numbers<[1], [0], [0], [1], [0, 0, 1, 1], [], []>} : vector<8x16xf32>, vector<16x128xf32>, vector<8x128xf32> -> vector<8x128xf32>
    %6 = vector.broadcast %1 : vector<1x128xf32> to vector<8x128xf32>
    %7 = arith.addf %5, %6 : vector<8x128xf32>
    %cst_6 = arith.constant 0.000000e+00 : f32
    %8 = vector.broadcast %cst_6 : f32 to vector<8x128xf32>
    %9 = arith.maximumf %7, %8 : vector<8x128xf32>
    %cst_7 = arith.constant dense<0.000000e+00> : vector<8x128xf32>
    %10 = tpu.matmul %9, %2, %cst_7 {dimension_numbers = #tpu.dot_dimension_numbers<[1], [0], [0], [1], [0, 0, 1, 1], [], []>} : vector<8x128xf32>, vector<128x128xf32>, vector<8x128xf32> -> vector<8x128xf32>
    %11 = vector.broadcast %3 : vector<1x128xf32> to vector<8x128xf32>
    %12 = arith.addf %10, %11 : vector<8x128xf32>
    %c0_8 = arith.constant 0 : index
    %c0_9 = arith.constant 0 : index
    %13 = vector.load %arg3[%c0_8, %c0_9] : memref<8x128xf32, #tpu.memory_space<vmem>>, vector<8x128xf32>
    tpu.vector_store %arg3[%c0_8, %c0_9], %12 {strides = array<i32>} : memref<8x128xf32, #tpu.memory_space<vmem>>, vector<8x128xf32>,
    return
  }
  func.func @transform_0(%arg0: i32) -> (i32, i32) {
    %c0_i32 = arith.constant 0 : i32
    %c0_i32_0 = arith.constant 0 : i32
    return %arg0, %c0_i32 : i32, i32
  }
  func.func @transform_1(%arg0: i32) -> (i32, i32) {
    %c0_i32 = arith.constant 0 : i32
    %c0_i32_0 = arith.constant 0 : i32
    %c0_i32_1 = arith.constant 0 : i32
    return %c0_i32, %c0_i32_0 : i32, i32
  }
  func.func @transform_2(%arg0: i32) -> (i32, i32) {
    %c0_i32 = arith.constant 0 : i32
    %c0_i32_0 = arith.constant 0 : i32
    return %arg0, %c0_i32 : i32, i32
  }
}

</mosaic_0001>

<llo_original>
// kernel: tpu_custom_call.1
$region0: #{tpu_custom_call.1}
  #allocation0 [shape = 'u32[]', space=smem, size = 0x4, offset = 0x4, fixed_abs, tag = 'smem constant byte address 0x4 - core index']
  #allocation1 [shape = 'u32[144,128]{1,0:T(1,128)}', space=vmem, size = 0x12000, scoped, tag = 'internal scratch']
  %s0 = inlined_call_operand.hbm [shape: f32[8,16], index: 0, kind: input, shape index: {}]
  %s1 = inlined_call_operand.hbm [shape: f32[160,128], index: 1, kind: input, shape index: {}]
  %s2 = inlined_call_operand.hbm [shape: f32[8,128], index: 2, kind: output, shape index: {}]
  %s3 = sld [smem:[#allocation0]]
  $region26: #{tpu_custom_call.1} parent=0
    _
  %s5 = ssub.s32 1, %s3
  %s6 = scalar_select 0, %s5, %s3
  $region1: #{tpu_custom_call.1} parent=0
    #allocation2 [shape = 'u8[4096]{0}', space=vmem, size = 0x1000, scoped, tag = 'input window, operand 0, single buffered']
    #allocation3 [shape = 's32[1]{0}', space=sflag, size = 0x4, scoped, tag = 'scoped memory for tpu_custom_call.1']
    #allocation4 [shape = 's32[1]{0}', space=sflag, size = 0x4, scoped, tag = 'scoped memory for tpu_custom_call.1']
    #allocation5 [shape = 'u8[81920]{0}', space=vmem, size = 0x14000, scoped, tag = 'input window, operand 1, single buffered']
    #allocation6 [shape = 's32[1]{0}', space=sflag, size = 0x4, scoped, tag = 'scoped memory for tpu_custom_call.1']
    #allocation7 [shape = 'u8[4096]{0}', space=vmem, size = 0x1000, scoped, tag = 'output window, operand 0, single buffered']
    %7 = vsyncpa [#allocation3], 0
    %8 = vsyncpa [#allocation6], 0
    %9 = vsyncpa [#allocation4], 0
    // Predicated region
    $region2: #{tpu_custom_call.1} parent=1 // pred_check
      _
    $region3: #{tpu_custom_call.1} parent=1 // pred_check_branch
      %11 = sbr.rel (0) target = $region5
    $region4: #{tpu_custom_call.1} parent=1 // pred_region
      %s13 = ssub.s32 128, 128
      %14 = vsyncadd [#allocation3], %s13
      %s16 = sshll.u32 [#allocation2], 4
      %s17 = int_to_ptr.vmem [resolvable:$true] %s16
      %19 = dma.hbm_to_vmem [thread:$0]  %s0, 128, %s17, [#allocation3]
    $region5: #{tpu_custom_call.1} parent=1 // pred_fallthru
      _
    // Predicated region
    $region6: #{tpu_custom_call.1} parent=1 // pred_check
      _
    $region7: #{tpu_custom_call.1} parent=1 // pred_check_branch
      %21 = sbr.rel (0) target = $region9
    $region8: #{tpu_custom_call.1} parent=1 // pred_region
      %s23 = ssub.s32 2560, 2560
      %24 = vsyncadd [#allocation6], %s23
      %s25 = sshll.u32 [#allocation5], 4
      %s26 = int_to_ptr.vmem [resolvable:$true] %s25
      %31 = dma.hbm_to_vmem [thread:$0]  %s1, 2560, %s26, [#allocation6], 128, 128, 8
    $region9: #{tpu_custom_call.1} parent=1 // pred_fallthru
      _
    // Predicated region
    $region10: #{tpu_custom_call.1} parent=1 // pred_check
      _
    $region11: #{tpu_custom_call.1} parent=1 // pred_check_branch
      %33 = sbr.rel (0) target = $region13
    $region12: #{tpu_custom_call.1} parent=1 // pred_region
      %34 = dma.done [#allocation3], 128
    $region13: #{tpu_custom_call.1} parent=1 // pred_fallthru
      _
    // Predicated region
    $region14: #{tpu_custom_call.1} parent=1 // pred_check
      _
    $region15: #{tpu_custom_call.1} parent=1 // pred_check_branch
      %36 = sbr.rel (0) target = $region17
    $region16: #{tpu_custom_call.1} parent=1 // pred_region
      %37 = dma.done [#allocation6], 2560
    $region17: #{tpu_custom_call.1} parent=1 // pred_fallthru
      _
    %v38 = vld [vmem:[#allocation5] sm:$0xff]
    %v39 = vld [vmem:[#allocation5 + $0x8] sm:$0xff]
    %v40 = vld [vmem:[#allocation5 + $0x10] sm:$0x1]
    %v41 = vld [vmem:[#allocation5 + $0x18] sm:$0xff]
    %v42 = vld [vmem:[#allocation5 + $0x20] sm:$0xff]
    %v43 = vld [vmem:[#allocation5 + $0x28] sm:$0xff]
    %v44 = vld [vmem:[#allocation5 + $0x30] sm:$0xff]
    %v45 = vld [vmem:[#allocation5 + $0x38] sm:$0xff]
    %v46 = vld [vmem:[#allocation5 + $0x40] sm:$0xff]
    %v47 = vld [vmem:[#allocation5 + $0x48] sm:$0xff]
    %v48 = vld [vmem:[#allocation5 + $0x50] sm:$0xff]
    %v49 = vld [vmem:[#allocation5 + $0x58] sm:$0xff]
    %v50 = vld [vmem:[#allocation5 + $0x60] sm:$0xff]
    %v51 = vld [vmem:[#allocation5 + $0x68] sm:$0xff]
    %v52 = vld [vmem:[#allocation5 + $0x70] sm:$0xff]
    %v53 = vld [vmem:[#allocation5 + $0x78] sm:$0xff]
    %v54 = vld [vmem:[#allocation5 + $0x80] sm:$0xff]
    %v55 = vld [vmem:[#allocation5 + $0x88] sm:$0xff]
    %v56 = vld [vmem:[#allocation5 + $0x90] sm:$0xff]
    %v57 = vld [vmem:[#allocation5 + $0x98] sm:$0x1]
    %v58 = vld [vmem:[#allocation2] sm:$0xff]
    %v59 = vlaneseq
    %v60 = vshrl.u32 %v59, 7
    %v61 = vsub.s32 0, %v60
    %v62 = vrot.slane %v40, %v61
    %vm63 = vcmask 130048
    %v65 = vsel %vm63, %v58, 0
    %67 = vmatprep.subr.mxu0 0.0
    %68 = vmatpush1.msra.mxu0 %v38
    %69 = vmatprep.subr.mxu0 0.0
    %70 = vmatpush1.msra.mxu0 %v39
    %71 = vmatprep.subr.mxu0 0.0
    %72 = vmatpush1.msra.mxu0 0.0
    %73 = vmatprep.subr.mxu0 0.0
    %74 = vmatpush1.msra.mxu0 0.0
    %75 = vmatprep.subr.mxu0 0.0
    %76 = vmatpush1.msra.mxu0 0.0
    %77 = vmatprep.subr.mxu0 0.0
    %78 = vmatpush1.msra.mxu0 0.0
    %79 = vmatprep.subr.mxu0 0.0
    %80 = vmatpush1.msra.mxu0 0.0
    %81 = vmatprep.subr.mxu0 0.0
    %82 = vmatpush1.msra.mxu0 0.0
    %83 = vmatprep.subr.mxu0 0.0
    %84 = vmatpush1.msra.mxu0 0.0
    %85 = vmatprep.subr.mxu0 0.0
    %86 = vmatpush1.msra.mxu0 0.0
    %87 = vmatprep.subr.mxu0 0.0
    %88 = vmatpush1.msra.mxu0 0.0
    %89 = vmatprep.subr.mxu0 0.0
    %90 = vmatpush1.msra.mxu0 0.0
    %91 = vmatprep.subr.mxu0 0.0
    %92 = vmatpush1.msra.mxu0 0.0
    %93 = vmatprep.subr.mxu0 0.0
    %94 = vmatpush1.msra.mxu0 0.0
    %95 = vmatprep.subr.mxu0 0.0
    %96 = vmatpush1.msra.mxu0 0.0
    %97 = vmatprep.subr.mxu0 0.0
    %98 = vmatpush1.msra.mxu0 0.0
    %99 = vmatprep.subr.mxu0 0.0
    %100 = vmatpush1.msra.mxu0 0.0
    %101 = vmatprep.subr.mxu0 0.0
    %102 = vmatpush1.msra.mxu0 0.0
    %103 = vmatprep.subr.mxu0 0.0
    %104 = vmatpush1.msra.mxu0 0.0
    %105 = vmatprep.subr.mxu0 0.0
    %106 = vmatpush1.msra.mxu0 0.0
    %107 = vmatprep.subr.mxu0 0.0
    %108 = vmatpush1.msra.mxu0 0.0
    %109 = vmatprep.subr.mxu0 0.0
    %110 = vmatpush1.msra.mxu0 0.0
    %111 = vmatprep.subr.mxu0 0.0
    %112 = vmatpush1.msra.mxu0 0.0
    %113 = vmatprep.subr.mxu0 0.0
    %114 = vmatpush1.msra.mxu0 0.0
    %115 = vmatprep.subr.mxu0 0.0
    %116 = vmatpush1.msra.mxu0 0.0
    %117 = vmatprep.subr.mxu0 0.0
    %118 = vmatpush1.msra.mxu0 0.0
    %119 = vmatprep.subr.mxu0 0.0
    %120 = vmatpush1.msra.mxu0 0.0
    %121 = vmatprep.subr.mxu0 0.0
    %122 = vmatpush1.msra.mxu0 0.0
    %123 = vmatprep.subr.mxu0 0.0
    %124 = vmatpush1.msra.mxu0 0.0
    %125 = vmatprep.subr.mxu0 0.0
    %126 = vmatpush1.msra.mxu0 0.0
    %127 = vmatprep.subr.mxu0 0.0
    %128 = vmatpush1.msra.mxu0 0.0
    %129 = vmatprep.subr.mxu0 0.0
    %130 = vmatpush1.msra.mxu0 0.0
    %131 = vmatprep.mubr.f32.mxu0 0.0
    %132 = vmatmul.mubr.f32.gmra.mrb[0].mxu0 %v65
    %v133 = vpop.f32.mrb[0].mxu0
    %v134 = vadd.f32 %v62, %v133
    %v135 = vpop.f32.mrb[0].mxu0
    %136 = vdwg.mxu0
    %v137 = vmax.f32 %v134, 0.0
    %v138 = vlaneseq
    %v139 = vshrl.u32 %v138, 7
    %v140 = vsub.s32 0, %v139
    %v141 = vrot.slane %v57, %v140
    %142 = vmatprep.subr.mxu0 0.0
    %143 = vmatpush1.msra.mxu0 %v41
    %144 = vmatprep.subr.mxu0 0.0
    %145 = vmatpush1.msra.mxu0 %v42
    %146 = vmatprep.subr.mxu0 0.0
    %147 = vmatpush1.msra.mxu0 %v43
    %148 = vmatprep.subr.mxu0 0.0
    %149 = vmatpush1.msra.mxu0 %v44
    %150 = vmatprep.subr.mxu0 0.0
    %151 = vmatpush1.msra.mxu0 %v45
    %152 = vmatprep.subr.mxu0 0.0
    %153 = vmatpush1.msra.mxu0 %v46
    %154 = vmatprep.subr.mxu0 0.0
    %155 = vmatpush1.msra.mxu0 %v47
    %156 = vmatprep.subr.mxu0 0.0
    %157 = vmatpush1.msra.mxu0 %v48
    %158 = vmatprep.subr.mxu0 0.0
    %159 = vmatpush1.msra.mxu0 %v49
    %160 = vmatprep.subr.mxu0 0.0
    %161 = vmatpush1.msra.mxu0 %v50
    %162 = vmatprep.subr.mxu0 0.0
    %163 = vmatpush1.msra.mxu0 %v51
    %164 = vmatprep.subr.mxu0 0.0
    %165 = vmatpush1.msra.mxu0 %v52
    %166 = vmatprep.subr.mxu0 0.0
    %167 = vmatpush1.msra.mxu0 %v53
    %168 = vmatprep.subr.mxu0 0.0
    %169 = vmatpush1.msra.mxu0 %v54
    %170 = vmatprep.subr.mxu0 0.0
    %171 = vmatpush1.msra.mxu0 %v55
    %172 = vmatprep.subr.mxu0 0.0
    %173 = vmatpush1.msra.mxu0 %v56
    %174 = vmatprep.subr.mxu0 0.0
    %175 = vmatpush1.msra.mxu0 0.0
    %176 = vmatprep.subr.mxu0 0.0
    %177 = vmatpush1.msra.mxu0 0.0
    %178 = vmatprep.subr.mxu0 0.0
    %179 = vmatpush1.msra.mxu0 0.0
    %180 = vmatprep.subr.mxu0 0.0
    %181 = vmatpush1.msra.mxu0 0.0
    %182 = vmatprep.subr.mxu0 0.0
    %183 = vmatpush1.msra.mxu0 0.0
    %184 = vmatprep.subr.mxu0 0.0
    %185 = vmatpush1.msra.mxu0 0.0
    %186 = vmatprep.subr.mxu0 0.0
    %187 = vmatpush1.msra.mxu0 0.0
    %188 = vmatprep.subr.mxu0 0.0
    %189 = vmatpush1.msra.mxu0 0.0
    %190 = vmatprep.subr.mxu0 0.0
    %191 = vmatpush1.msra.mxu0 0.0
    %192 = vmatprep.subr.mxu0 0.0
    %193 = vmatpush1.msra.mxu0 0.0
    %194 = vmatprep.subr.mxu0 0.0
    %195 = vmatpush1.msra.mxu0 0.0
    %196 = vmatprep.subr.mxu0 0.0
    %197 = vmatpush1.msra.mxu0 0.0
    %198 = vmatprep.subr.mxu0 0.0
    %199 = vmatpush1.msra.mxu0 0.0
    %200 = vmatprep.subr.mxu0 0.0
    %201 = vmatpush1.msra.mxu0 0.0
    %202 = vmatprep.subr.mxu0 0.0
    %203 = vmatpush1.msra.mxu0 0.0
    %204 = vmatprep.subr.mxu0 0.0
    %205 = vmatpush1.msra.mxu0 0.0
    %206 = vmatprep.mubr.f32.mxu0 0.0
    %207 = vmatmul.mubr.f32.gmra.mrb[0].mxu0 %v137
    %v208 = vpop.f32.mrb[0].mxu0
    %v209 = vadd.f32 %v141, %v208
    %v210 = vpop.f32.mrb[0].mxu0
    %211 = vdwg.mxu0
    %212 = vst [vmem:[#allocation7] sm:$0xff] %v209
    // Predicated region
    $region18: #{tpu_custom_call.1} parent=1 // pred_check
      _
    $region19: #{tpu_custom_call.1} parent=1 // pred_check_branch
      %214 = sbr.rel (0) target = $region21
    $region20: #{tpu_custom_call.1} parent=1 // pred_region
      %s216 = ssub.s32 128, 128
      %217 = vsyncadd [#allocation4], %s216
      %s219 = sshll.u32 [#allocation7], 4
      %s220 = int_to_ptr.vmem [resolvable:$true] %s219
      %222 = dma.vmem_to_hbm [thread:$0]  %s220, 128, %s2, [#allocation4]
    $region21: #{tpu_custom_call.1} parent=1 // pred_fallthru
      _
    // Predicated region
    $region22: #{tpu_custom_call.1} parent=1 // pred_check
      _
    $region23: #{tpu_custom_call.1} parent=1 // pred_check_branch
      %224 = sbr.rel (0) target = $region25
    $region24: #{tpu_custom_call.1} parent=1 // pred_region
      %225 = dma.done [#allocation4], 128
    $region25: #{tpu_custom_call.1} parent=1 // pred_fallthru
      _
    %226 = vsyncpa [#allocation3], 1
    %227 = vsyncpa [#allocation6], 1
    %228 = vsyncpa [#allocation4], 1

</llo_original>
